<compile_context>
chip_gen: v5e
topology: v5e:2x2
jax: 0.10.0
libtpu: 0.0.40
codegen_flags: <defaults>
</compile_context>

<pallas_src>
import math
import functools

import numpy as np
import jax
import jax.numpy as jnp
from jax import lax
from jax.experimental import pallas as pl
from jax.experimental.pallas import tpu as pltpu


# ----------------------------- config (small) --------------------------------
BATCH = 4
IN_C, IN_H, IN_W = 3, 16, 16          # input_dims, scaled down from (3, 32, 32)
NZ = 32                                # generator latent dim
HID_C = 8                              # model hidden channels (one BN layer -> one hook)
NUM_CLASSES = 10
TAU = 1000.0
ALPHA_PR = 0.001
ALPHA_RF = 5.0
BN_EPS = 1e-5


# --------------------- Gaussiansmoothing(3, 5, 1) weights --------------------
def _gaussian_kernel_1d(size=5, sigma=1.0):
    coords = np.arange(size, dtype=np.float64)
    mean = (size - 1) / 2.0
    g = (1.0 / (sigma * math.sqrt(2.0 * math.pi))) * np.exp(-(((coords - mean) / sigma) ** 2) / 2.0)
    # 2-D kernel in the reference = outer(g, g) / outer(g, g).sum()
    #                             = outer(g / g.sum(), g / g.sum())  -> exactly separable.
    return g / g.sum()


def _smooth_matrix_1d(n, g):
    # 1-D operator: (reflect pad by 2) followed by valid 5-tap convolution,
    # expressed as an (n, n) banded matrix with the reflect weights folded in.
    m = np.zeros((n, n), np.float64)
    idx = np.concatenate([[2, 1], np.arange(n), [n - 2, n - 3]]).astype(np.int64)
    for i in range(n):
        for t in range(5):
            m[i, idx[i + t]] += g[t]
    return m


@functools.lru_cache(maxsize=None)
def _smooth_matrix_2d(h, w):
    # smooth(X) = S_H @ X @ S_W.T  (per image plane).  On the row-major flattened
    # layout x_flat[n, p*W+q]:   smooth_flat = x_flat @ kron(S_H, S_W).T
    g = _gaussian_kernel_1d(5, 1.0)
    sh = _smooth_matrix_1d(h, g)
    sw = _smooth_matrix_1d(w, g)
    return np.kron(sh, sw).T.astype(np.float32)          # (h*w, h*w)


# ============================ fused loss kernel ================================
def _fused_loss_kernel(xf_ref, smat_ref, logits_ref, featf_ref, stats_ref, out_ref,
                       *, num_classes, inv_tau, inv_pix, inv_n, inv_b, inv_lognc):
    # ------------------------------------------------------------------ pr ----
    # MSE(x, gaussian-smooth(reflect-pad(x)))  — one lane-dense MXU matmul.
    xf = xf_ref[...]                                       # (B*C, H*W) f32
    sm = jnp.dot(xf, smat_ref[...], preferred_element_type=jnp.float32)
    diff = xf - sm
    pr = jnp.sum(diff * diff) * inv_pix                    # F.mse_loss (mean)

    # -------------------------------------------------------------- ce / cb ---
    # NOTE: at realistic NUM_CLASSES pad the class axis to 128 (with -inf for the
    # max/softmax path); negligible at the toy size.
    logits = logits_ref[...].astype(jnp.float32)           # (B, NC)
    col = lax.broadcasted_iota(jnp.int32, logits.shape, 1)

    # target = argmax(output, dim=1) (lowest index among ties; torch tie-break is
    # implementation-defined, so this only matters on exact ties)
    mx = jnp.max(logits, axis=1, keepdims=True)
    target = jnp.min(jnp.where(logits == mx, col, num_classes), axis=1, keepdims=True)
    onehot = (col == target).astype(jnp.float32)

    # CrossEntropyLoss(output / tau, target), mean over batch
    z = logits * inv_tau
    zmax = mx * inv_tau                                    # max(z) == max(logits)/tau (tau > 0)
    lse = jnp.log(jnp.sum(jnp.exp(z - zmax), axis=1, keepdims=True)) + zmax
    ce = jnp.sum(onehot * (lse - z)) * inv_b

    # class balance: mu = softmax(output, 1).mean(0);  1 + sum(mu*log(mu))/log(NC)
    # exact divide here (review: approx reciprocal biases cb and its gradient).
    p = jnp.exp(logits - mx)
    p = p / jnp.sum(p, axis=1, keepdims=True)
    mu = jnp.sum(p, axis=0, keepdims=True) * inv_b         # (1, NC)
    ent = jnp.sum(mu * jnp.log(jnp.maximum(mu, 1e-30))) * inv_lognc
    cb = 1.0 + ent

    # ------------------------------------------------------------------ rf ----
    # r_feature of the single BN hook: ||rv - var||_2 + ||rm - mean||_2 over
    # channels, with per-channel batch stats (biased var) of the BN input.
    # Stats via tall-skinny MXU matmuls on the (B*H*W, C) slab, centered by
    # running_mean for numerical conditioning of the one-pass variance.
    f = featf_ref[...]                                     # (B*Hf*Wf, Cf) f32
    stats = stats_ref[...]                                 # (2, Cf): [running_mean; running_var]
    rm = stats[0:1, :]
    rv = stats[1:2, :]
    fc = f - rm                                            # centered features
    ones_row = jnp.ones((1, f.shape[0]), jnp.float32)
    s1 = jnp.dot(ones_row, fc, preferred_element_type=jnp.float32)        # (1, Cf)
    s2 = jnp.dot(ones_row, fc * fc, preferred_element_type=jnp.float32)   # (1, Cf)
    mc = s1 * inv_n                                        # batch_mean - running_mean
    var = jnp.maximum(s2 * inv_n - mc * mc, 0.0)           # == biased Var(f), well conditioned
    d_v = rv - var                                         # running_var - batch_var
    # running_mean - batch_mean == -mc, so ||d_m||_2 == ||mc||_2
    rf = jnp.sqrt(jnp.sum(d_v * d_v)) + jnp.sqrt(jnp.sum(mc * mc))

    # --------------------------------------------------------------- output ---
    out_ref[0, 0] = ce
    out_ref[0, 1] = cb
    out_ref[0, 2] = pr
    out_ref[0, 3] = rf


def fused_losses(x, logits, feat_nhwc, running_mean, running_var):
    """One pallas_call computing (ce, cb, pr, rf).

    x          : (B, C, H, W) NCHW generator output
    logits     : (B, NUM_CLASSES)
    feat_nhwc  : (B, Hf, Wf, Cf) BN-hook input feature (already NHWC from the conv)
    """
    B, C, H, W = x.shape
    Bf, Hf, Wf, Cf = feat_nhwc.shape

    # Lane-dense slabs for the kernel (pure reshapes; no transposes).
    x_flat = x.reshape(B * C, H * W).astype(jnp.float32)          # (12, 256)
    feat_flat = feat_nhwc.reshape(Bf * Hf * Wf, Cf).astype(jnp.float32)  # (1024, 8)
    stats = jnp.stack(
        [running_mean.astype(jnp.float32), running_var.astype(jnp.float32)], axis=0
    )                                                              # (2, Cf)
    smat = jnp.asarray(_smooth_matrix_2d(H, W))                    # (H*W, H*W)

    kern = functools.partial(
        _fused_loss_kernel,
        num_classes=NUM_CLASSES,
        inv_tau=1.0 / TAU,
        inv_pix=1.0 / float(B * C * H * W),
        inv_n=1.0 / float(Bf * Hf * Wf),
        inv_b=1.0 / float(B),
        inv_lognc=1.0 / math.log(NUM_CLASSES),
    )
    out = pl.pallas_call(
        kern,
        out_shape=jax.ShapeDtypeStruct((1, 4), jnp.float32),
        in_specs=[
            pl.BlockSpec(memory_space=pltpu.MemorySpace.VMEM),   # x_flat
            pl.BlockSpec(memory_space=pltpu.MemorySpace.VMEM),   # smoothing matrix
            pl.BlockSpec(memory_space=pltpu.MemorySpace.VMEM),   # logits
            pl.BlockSpec(memory_space=pltpu.MemorySpace.VMEM),   # feat (B*H*W, C)
            pl.BlockSpec(memory_space=pltpu.MemorySpace.VMEM),   # stacked running stats
        ],
        out_specs=pl.BlockSpec(memory_space=pltpu.MemorySpace.SMEM),
        compiler_params=pltpu.CompilerParams(vmem_limit_bytes=32 * 1024 * 1024),
    )(x_flat, smat, logits, feat_flat, stats)
    return out[0, 0], out[0, 1], out[0, 2], out[0, 3]


# =================== external modules (plain-JAX glue) ========================
def init_params(key):
    ks = jax.random.split(key, 5)
    return dict(
        # generator: z -> tanh(Wz + b) -> (B, 3, H, W)
        gen_w=jax.random.normal(ks[0], (NZ, IN_C * IN_H * IN_W), jnp.float32) * 0.05,
        gen_b=jnp.zeros((IN_C * IN_H * IN_W,), jnp.float32),
        # frozen classifier: conv3x3 -> BN(eval) -> ReLU -> GAP -> linear
        conv_w=jax.random.normal(ks[1], (HID_C, IN_C, 3, 3), jnp.float32) * 0.1,
        conv_b=jnp.zeros((HID_C,), jnp.float32),
        bn_gamma=jnp.ones((HID_C,), jnp.float32),
        bn_beta=jnp.zeros((HID_C,), jnp.float32),
        bn_rm=jax.random.normal(ks[2], (HID_C,), jnp.float32) * 0.1,
        bn_rv=jnp.abs(jax.random.normal(ks[3], (HID_C,), jnp.float32)) * 0.5 + 0.5,
        fc_w=jax.random.normal(ks[4], (HID_C, NUM_CLASSES), jnp.float32) * 0.1,
        fc_b=jnp.zeros((NUM_CLASSES,), jnp.float32),
    )


def generator_sample(params, key, batch_size):
    z = jax.random.normal(key, (batch_size, NZ), jnp.float32)
    x = jnp.tanh(z @ params["gen_w"] + params["gen_b"])
    return x.reshape(batch_size, IN_C, IN_H, IN_W)           # NCHW


def model_forward(params, x):
    # x: (B, 3, H, W) NCHW.  The conv emits NHWC directly (dimension_numbers) so the
    # BN-hook feature is already in the lane-dense (B*H*W, C)-friendly layout — no
    # wrapper transpose.
    feat = lax.conv_general_dilated(
        x, params["conv_w"], window_strides=(1, 1), padding="SAME",
        dimension_numbers=("NCHW", "OIHW", "NHWC"),
    ) + params["conv_b"][None, None, None, :]                 # (B, H, W, HID_C)
    # eval-mode BatchNorm2d (frozen model) — `feat` is what the hook captures (BN input)
    rm = params["bn_rm"][None, None, None, :]
    rv = params["bn_rv"][None, None, None, :]
    h = (feat - rm) / jnp.sqrt(rv + BN_EPS)
    h = h * params["bn_gamma"][None, None, None, :] + params["bn_beta"][None, None, None, :]
    h = jnp.maximum(h, 0.0)
    pooled = jnp.mean(h, axis=(1, 2))                         # (B, HID_C)
    logits = pooled @ params["fc_w"] + params["fc_b"]         # (B, NUM_CLASSES)
    return logits, feat


# ============================== train_step ====================================
def train_step_losses(params, key):
    x = generator_sample(params, key, BATCH)
    logits, feat = model_forward(params, x)
    loss_ce, loss_cb, pr_raw, rf_raw = fused_losses(
        x, logits, feat, params["bn_rm"], params["bn_rv"]
    )
    loss_pr = ALPHA_PR * pr_raw
    loss_rf = ALPHA_RF * rf_raw
    total = loss_ce + loss_cb + loss_pr + loss_rf
    return {"ce": loss_ce, "cb": loss_cb, "pr": loss_pr, "rf": loss_rf, "total": total}


if __name__ == "__main__":
    key = jax.random.PRNGKey(0)
    pkey, skey = jax.random.split(key)
    params = init_params(pkey)
    losses = jax.jit(train_step_losses)(params, skey)
    losses = jax.block_until_ready(losses)
    print("KERNEL_OK")
</pallas_src>

<mosaic_0001>
module attributes {stable_mosaic.version = 11 : i64} {
  func.func @_fused_loss_kernel(%arg0: memref<12x256xf32, #tpu.memory_space<vmem>>, %arg1: memref<256x256xf32, #tpu.memory_space<vmem>>, %arg2: memref<4x10xf32, #tpu.memory_space<vmem>>, %arg3: memref<1024x8xf32, #tpu.memory_space<vmem>>, %arg4: memref<2x8xf32, #tpu.memory_space<vmem>>, %arg5: memref<1x4xf32, #tpu.memory_space<smem>>) attributes {dimension_semantics = [], scalar_prefetch = 0 : i64, scratch_operands = 0 : i64, tpu.core_type = #tpu.core_type<tc>} {
    %c0 = arith.constant 0 : index
    %c0_0 = arith.constant 0 : index
    %0 = vector.load %arg0[%c0, %c0_0] : memref<12x256xf32, #tpu.memory_space<vmem>>, vector<12x256xf32>
    %c0_1 = arith.constant 0 : index
    %c0_2 = arith.constant 0 : index
    %1 = vector.load %arg1[%c0_1, %c0_2] : memref<256x256xf32, #tpu.memory_space<vmem>>, vector<256x256xf32>
    %cst = arith.constant dense<0.000000e+00> : vector<12x256xf32>
    %2 = tpu.matmul %0, %1, %cst {dimension_numbers = #tpu.dot_dimension_numbers<[1], [0], [0], [1], [0, 0, 1, 1], [], []>} : vector<12x256xf32>, vector<256x256xf32>, vector<12x256xf32> -> vector<12x256xf32>
    %3 = arith.subf %0, %2 : vector<12x256xf32>
    %4 = arith.mulf %3, %3 : vector<12x256xf32>
    %5 = vector.shape_cast %4 : vector<12x256xf32> to vector<1x12x256xf32>
    %cst_3 = arith.constant dense<0.000000e+00> : vector<1xf32>
    %6 = vector.multi_reduction <add>, %5, %cst_3 [1, 2] : vector<1x12x256xf32> to vector<1xf32>
    %7 = vector.shape_cast %6 : vector<1xf32> to vector<1x1x1xf32>
    %8 = vector.extract %7[0, 0, 0] : f32 from vector<1x1x1xf32>
    %cst_4 = arith.constant 3.25520843E-4 : f32
    %9 = arith.mulf %8, %cst_4 : f32
    %c0_5 = arith.constant 0 : index
    %c0_6 = arith.constant 0 : index
    %10 = vector.load %arg2[%c0_5, %c0_6] : memref<4x10xf32, #tpu.memory_space<vmem>>, vector<4x10xf32>
    %11 = tpu.iota {dimensions = array<i32: 1>} : vector<4x10xi32>
    %cst_7 = arith.constant dense<0xFF800000> : vector<4xf32>
    %12 = vector.multi_reduction <maximumf>, %10, %cst_7 [1] : vector<4x10xf32> to vector<4xf32>
    %13 = vector.shape_cast %12 : vector<4xf32> to vector<4x1xf32>
    %14 = vector.broadcast %13 : vector<4x1xf32> to vector<4x10xf32>
    %15 = arith.cmpf oeq, %10, %14 : vector<4x10xf32>
    %c10_i32 = arith.constant 10 : i32
    %16 = vector.broadcast %c10_i32 : i32 to vector<4x10xi32>
    %17 = arith.select %15, %11, %16 : vector<4x10xi1>, vector<4x10xi32>
    %cst_8 = arith.constant dense<2147483647> : vector<4xi32>
    %18 = vector.multi_reduction <minsi>, %17, %cst_8 [1] : vector<4x10xi32> to vector<4xi32>
    %19 = vector.shape_cast %18 : vector<4xi32> to vector<4x1xi32>
    %20 = vector.broadcast %19 : vector<4x1xi32> to vector<4x10xi32>
    %21 = arith.cmpi eq, %11, %20 : vector<4x10xi32>
    %22 = arith.extui %21 : vector<4x10xi1> to vector<4x10xi32>
    %23 = arith.sitofp %22 : vector<4x10xi32> to vector<4x10xf32>
    %cst_9 = arith.constant 1.000000e-03 : f32
    %24 = vector.broadcast %cst_9 : f32 to vector<4x10xf32>
    %25 = arith.mulf %10, %24 : vector<4x10xf32>
    %cst_10 = arith.constant 1.000000e-03 : f32
    %26 = vector.broadcast %cst_10 : f32 to vector<4x1xf32>
    %27 = arith.mulf %13, %26 : vector<4x1xf32>
    %28 = vector.broadcast %27 : vector<4x1xf32> to vector<4x10xf32>
    %29 = arith.subf %25, %28 : vector<4x10xf32>
    %30 = math.exp %29 : vector<4x10xf32>
    %cst_11 = arith.constant dense<0.000000e+00> : vector<4xf32>
    %31 = vector.multi_reduction <add>, %30, %cst_11 [1] : vector<4x10xf32> to vector<4xf32>
    %32 = vector.shape_cast %31 : vector<4xf32> to vector<4x1xf32>
    %33 = math.log %32 : vector<4x1xf32>
    %34 = arith.addf %33, %27 : vector<4x1xf32>
    %35 = vector.broadcast %34 : vector<4x1xf32> to vector<4x10xf32>
    %36 = arith.subf %35, %25 : vector<4x10xf32>
    %37 = arith.mulf %23, %36 : vector<4x10xf32>
    %38 = vector.shape_cast %37 : vector<4x10xf32> to vector<1x4x10xf32>
    %cst_12 = arith.constant dense<0.000000e+00> : vector<1xf32>
    %39 = vector.multi_reduction <add>, %38, %cst_12 [1, 2] : vector<1x4x10xf32> to vector<1xf32>
    %40 = vector.shape_cast %39 : vector<1xf32> to vector<1x1x1xf32>
    %41 = vector.extract %40[0, 0, 0] : f32 from vector<1x1x1xf32>
    %cst_13 = arith.constant 2.500000e-01 : f32
    %42 = arith.mulf %41, %cst_13 : f32
    %43 = vector.broadcast %13 : vector<4x1xf32> to vector<4x10xf32>
    %44 = arith.subf %10, %43 : vector<4x10xf32>
    %45 = math.exp %44 : vector<4x10xf32>
    %cst_14 = arith.constant dense<0.000000e+00> : vector<4xf32>
    %46 = vector.multi_reduction <add>, %45, %cst_14 [1] : vector<4x10xf32> to vector<4xf32>
    %47 = vector.shape_cast %46 : vector<4xf32> to vector<4x1xf32>
    %48 = vector.broadcast %47 : vector<4x1xf32> to vector<4x10xf32>
    %49 = arith.divf %45, %48 : vector<4x10xf32>
    %cst_15 = arith.constant dense<0.000000e+00> : vector<10xf32>
    %50 = vector.multi_reduction <add>, %49, %cst_15 [0] : vector<4x10xf32> to vector<10xf32>
    %51 = vector.shape_cast %50 : vector<10xf32> to vector<1x10xf32>
    %cst_16 = arith.constant 2.500000e-01 : f32
    %52 = vector.broadcast %cst_16 : f32 to vector<1x10xf32>
    %53 = arith.mulf %51, %52 : vector<1x10xf32>
    %cst_17 = arith.constant 1.000000e-30 : f32
    %54 = vector.broadcast %cst_17 : f32 to vector<1x10xf32>
    %55 = arith.maximumf %53, %54 : vector<1x10xf32>
    %56 = math.log %55 : vector<1x10xf32>
    %57 = arith.mulf %53, %56 : vector<1x10xf32>
    %58 = vector.shape_cast %57 : vector<1x10xf32> to vector<1x1x10xf32>
    %cst_18 = arith.constant dense<0.000000e+00> : vector<1xf32>
    %59 = vector.multi_reduction <add>, %58, %cst_18 [1, 2] : vector<1x1x10xf32> to vector<1xf32>
    %60 = vector.shape_cast %59 : vector<1xf32> to vector<1x1x1xf32>
    %61 = vector.extract %60[0, 0, 0] : f32 from vector<1x1x1xf32>
    %cst_19 = arith.constant 0.434294492 : f32
    %62 = arith.mulf %61, %cst_19 : f32
    %cst_20 = arith.constant 1.000000e+00 : f32
    %63 = arith.addf %cst_20, %62 : f32
    %c0_21 = arith.constant 0 : index
    %c0_22 = arith.constant 0 : index
    %64 = vector.load %arg3[%c0_21, %c0_22] : memref<1024x8xf32, #tpu.memory_space<vmem>>, vector<1024x8xf32>
    %c0_23 = arith.constant 0 : index
    %c0_24 = arith.constant 0 : index
    %65 = vector.load %arg4[%c0_23, %c0_24] : memref<2x8xf32, #tpu.memory_space<vmem>>, vector<2x8xf32>
    %66 = vector.extract_strided_slice %65 {offsets = [0, 0], sizes = [1, 8], strides = [1, 1]} : vector<2x8xf32> to vector<1x8xf32>
    %67 = vector.extract_strided_slice %65 {offsets = [1, 0], sizes = [1, 8], strides = [1, 1]} : vector<2x8xf32> to vector<1x8xf32>
    %68 = vector.broadcast %66 : vector<1x8xf32> to vector<1024x8xf32>
    %69 = arith.subf %64, %68 : vector<1024x8xf32>
    %cst_25 = arith.constant 1.000000e+00 : f32
    %70 = vector.broadcast %cst_25 : f32 to vector<1x1024xf32>
    %cst_26 = arith.constant dense<0.000000e+00> : vector<1x8xf32>
    %71 = tpu.matmul %70, %69, %cst_26 {dimension_numbers = #tpu.dot_dimension_numbers<[1], [0], [0], [1], [0, 0, 1, 1], [], []>} : vector<1x1024xf32>, vector<1024x8xf32>, vector<1x8xf32> -> vector<1x8xf32>
    %72 = arith.mulf %69, %69 : vector<1024x8xf32>
    %cst_27 = arith.constant dense<0.000000e+00> : vector<1x8xf32>
    %73 = tpu.matmul %70, %72, %cst_27 {dimension_numbers = #tpu.dot_dimension_numbers<[1], [0], [0], [1], [0, 0, 1, 1], [], []>} : vector<1x1024xf32>, vector<1024x8xf32>, vector<1x8xf32> -> vector<1x8xf32>
    %cst_28 = arith.constant 9.765625E-4 : f32
    %74 = vector.broadcast %cst_28 : f32 to vector<1x8xf32>
    %75 = arith.mulf %71, %74 : vector<1x8xf32>
    %cst_29 = arith.constant 9.765625E-4 : f32
    %76 = vector.broadcast %cst_29 : f32 to vector<1x8xf32>
    %77 = arith.mulf %73, %76 : vector<1x8xf32>
    %78 = arith.mulf %75, %75 : vector<1x8xf32>
    %79 = arith.subf %77, %78 : vector<1x8xf32>
    %cst_30 = arith.constant 0.000000e+00 : f32
    %80 = vector.broadcast %cst_30 : f32 to vector<1x8xf32>
    %81 = arith.maximumf %79, %80 : vector<1x8xf32>
    %82 = arith.subf %67, %81 : vector<1x8xf32>
    %83 = arith.mulf %82, %82 : vector<1x8xf32>
    %84 = vector.shape_cast %83 : vector<1x8xf32> to vector<1x1x8xf32>
    %cst_31 = arith.constant dense<0.000000e+00> : vector<1xf32>
    %85 = vector.multi_reduction <add>, %84, %cst_31 [1, 2] : vector<1x1x8xf32> to vector<1xf32>
    %86 = vector.shape_cast %85 : vector<1xf32> to vector<1x1x1xf32>
    %87 = vector.extract %86[0, 0, 0] : f32 from vector<1x1x1xf32>
    %88 = math.sqrt %87 : f32
    %89 = arith.mulf %75, %75 : vector<1x8xf32>
    %90 = vector.shape_cast %89 : vector<1x8xf32> to vector<1x1x8xf32>
    %cst_32 = arith.constant dense<0.000000e+00> : vector<1xf32>
    %91 = vector.multi_reduction <add>, %90, %cst_32 [1, 2] : vector<1x1x8xf32> to vector<1xf32>
    %92 = vector.shape_cast %91 : vector<1xf32> to vector<1x1x1xf32>
    %93 = vector.extract %92[0, 0, 0] : f32 from vector<1x1x1xf32>
    %94 = math.sqrt %93 : f32
    %95 = arith.addf %88, %94 : f32
    %c0_33 = arith.constant 0 : index
    %c0_34 = arith.constant 0 : index
    %96 = memref.load %arg5[%c0_33, %c0_34] : memref<1x4xf32, #tpu.memory_space<smem>>
    memref.store %42, %arg5[%c0_33, %c0_34] : memref<1x4xf32, #tpu.memory_space<smem>>
    %c0_35 = arith.constant 0 : index
    %c1 = arith.constant 1 : index
    %97 = memref.load %arg5[%c0_35, %c1] : memref<1x4xf32, #tpu.memory_space<smem>>
    memref.store %63, %arg5[%c0_35, %c1] : memref<1x4xf32, #tpu.memory_space<smem>>
    %c0_36 = arith.constant 0 : index
    %c2 = arith.constant 2 : index
    %98 = memref.load %arg5[%c0_36, %c2] : memref<1x4xf32, #tpu.memory_space<smem>>
    memref.store %9, %arg5[%c0_36, %c2] : memref<1x4xf32, #tpu.memory_space<smem>>
    %c0_37 = arith.constant 0 : index
    %c3 = arith.constant 3 : index
    %99 = memref.load %arg5[%c0_37, %c3] : memref<1x4xf32, #tpu.memory_space<smem>>
    memref.store %95, %arg5[%c0_37, %c3] : memref<1x4xf32, #tpu.memory_space<smem>>
    return
  }
}

</mosaic_0001>

<llo_original>
// kernel: train_step_losses.1
$region0: #{train_step_losses.1}
  #allocation0 [shape = 'u32[]', space=smem, size = 0x4, offset = 0x4, fixed_abs, tag = 'smem constant byte address 0x4 - core index']
  #allocation1 [shape = 'u32[72,128]{1,0:T(1,128)}', space=vmem, size = 0x9000, scoped, tag = 'internal scratch']
  %s0 = inlined_call_operand.vmem [shape: f32[12,256], index: 0, kind: input, shape index: {}]
  %s1 = inlined_call_operand.vmem [shape: f32[256,256], index: 1, kind: input, shape index: {}]
  %s2 = inlined_call_operand.vmem [shape: f32[4,10], index: 2, kind: input, shape index: {}]
  %s3 = inlined_call_operand.vmem [shape: f32[1024,8], index: 3, kind: input, shape index: {}]
  %s4 = inlined_call_operand.vmem [shape: f32[2,8], index: 4, kind: input, shape index: {}]
  %s5 = inlined_call_operand.vmem [shape: f32[1,4], index: 5, kind: output, shape index: {}]
  %s6 = sld [smem:[#allocation0]]
  $region30: #{train_step_losses.1} parent=0
    _
  %s8 = ssub.s32 1, %s6
  %s9 = scalar_select 0, %s8, %s6
  $region1: #{train_step_losses.1} parent=0
    #allocation2 [shape = 'u8[512]{0}', space=smem, size = 0x200, scoped, tag = 'output window, operand 0, single buffered']
    #allocation3 [shape = 's32[1]{0}', space=sflag, size = 0x4, scoped, tag = 'scoped memory for train_step_losses.1']
    %10 = vsyncpa [#allocation3], 0
    // Predicated region
    $region2: #{train_step_losses.1} parent=1 // pred_check
      _
    $region3: #{train_step_losses.1} parent=1 // pred_check_branch
      %12 = sbr.rel (0) target = $region5
    $region4: #{train_step_losses.1} parent=1 // pred_region
      _
    $region5: #{train_step_losses.1} parent=1 // pred_fallthru
      _
    // Predicated region
    $region6: #{train_step_losses.1} parent=1 // pred_check
      _
    $region7: #{train_step_losses.1} parent=1 // pred_check_branch
      %14 = sbr.rel (0) target = $region9
    $region8: #{train_step_losses.1} parent=1 // pred_region
      _
    $region9: #{train_step_losses.1} parent=1 // pred_fallthru
      _
    // Predicated region
    $region10: #{train_step_losses.1} parent=1 // pred_check
      _
    $region11: #{train_step_losses.1} parent=1 // pred_check_branch
      %16 = sbr.rel (0) target = $region13
    $region12: #{train_step_losses.1} parent=1 // pred_region
      _
    $region13: #{train_step_losses.1} parent=1 // pred_fallthru
      _
    // Predicated region
    $region14: #{train_step_losses.1} parent=1 // pred_check
      _
    $region15: #{train_step_losses.1} parent=1 // pred_check_branch
      %18 = sbr.rel (0) target = $region17
    $region16: #{train_step_losses.1} parent=1 // pred_region
      _
    $region17: #{train_step_losses.1} parent=1 // pred_fallthru
      _
    // Predicated region
    $region18: #{train_step_losses.1} parent=1 // pred_check
      _
    $region19: #{train_step_losses.1} parent=1 // pred_check_branch
      %20 = sbr.rel (0) target = $region21
    $region20: #{train_step_losses.1} parent=1 // pred_region
      _
    $region21: #{train_step_losses.1} parent=1 // pred_fallthru
      _
    %v21 = vld [vmem:[%s0] sm:$0xff]
    %v22 = vld [vmem:[%s0 + $0x8] sm:$0xff]
    %v23 = vld [vmem:[%s0 + $0x10] sm:$0xf]
    %v24 = vld [vmem:[%s0 + $0x18] sm:$0xf]
    %v25 = vld [vmem:[%s1] sm:$0xff]
    %v26 = vld [vmem:[%s1 + $0x8] sm:$0xff]
    %v27 = vld [vmem:[%s1 + $0x10] sm:$0xff]
    %v28 = vld [vmem:[%s1 + $0x18] sm:$0xff]
    %v29 = vld [vmem:[%s1 + $0x20] sm:$0xff]
    %v30 = vld [vmem:[%s1 + $0x28] sm:$0xff]
    %v31 = vld [vmem:[%s1 + $0x30] sm:$0xff]
    %v32 = vld [vmem:[%s1 + $0x38] sm:$0xff]
    %v33 = vld [vmem:[%s1 + $0x40] sm:$0xff]
    %v34 = vld [vmem:[%s1 + $0x48] sm:$0xff]
    %v35 = vld [vmem:[%s1 + $0x50] sm:$0xff]
    %v36 = vld [vmem:[%s1 + $0x58] sm:$0xff]
    %v37 = vld [vmem:[%s1 + $0x60] sm:$0xff]
    %v38 = vld [vmem:[%s1 + $0x68] sm:$0xff]
    %v39 = vld [vmem:[%s1 + $0x70] sm:$0xff]
    %v40 = vld [vmem:[%s1 + $0x78] sm:$0xff]
    %v41 = vld [vmem:[%s1 + $0x80] sm:$0xff]
    %v42 = vld [vmem:[%s1 + $0x88] sm:$0xff]
    %v43 = vld [vmem:[%s1 + $0x90] sm:$0xff]
    %v44 = vld [vmem:[%s1 + $0x98] sm:$0xff]
    %v45 = vld [vmem:[%s1 + $0xa0] sm:$0xff]
    %v46 = vld [vmem:[%s1 + $0xa8] sm:$0xff]
    %v47 = vld [vmem:[%s1 + $0xb0] sm:$0xff]
    %v48 = vld [vmem:[%s1 + $0xb8] sm:$0xff]
    %v49 = vld [vmem:[%s1 + $0xc0] sm:$0xff]
    %v50 = vld [vmem:[%s1 + $0xc8] sm:$0xff]
    %v51 = vld [vmem:[%s1 + $0xd0] sm:$0xff]
    %v52 = vld [vmem:[%s1 + $0xd8] sm:$0xff]
    %v53 = vld [vmem:[%s1 + $0xe0] sm:$0xff]
    %v54 = vld [vmem:[%s1 + $0xe8] sm:$0xff]
    %v55 = vld [vmem:[%s1 + $0xf0] sm:$0xff]
    %v56 = vld [vmem:[%s1 + $0xf8] sm:$0xff]
    %v57 = vld [vmem:[%s1 + $0x100] sm:$0xff]
    %v58 = vld [vmem:[%s1 + $0x108] sm:$0xff]
    %v59 = vld [vmem:[%s1 + $0x110] sm:$0xff]
    %v60 = vld [vmem:[%s1 + $0x118] sm:$0xff]
    %v61 = vld [vmem:[%s1 + $0x120] sm:$0xff]
    %v62 = vld [vmem:[%s1 + $0x128] sm:$0xff]
    %v63 = vld [vmem:[%s1 + $0x130] sm:$0xff]
    %v64 = vld [vmem:[%s1 + $0x138] sm:$0xff]
    %v65 = vld [vmem:[%s1 + $0x140] sm:$0xff]
    %v66 = vld [vmem:[%s1 + $0x148] sm:$0xff]
    %v67 = vld [vmem:[%s1 + $0x150] sm:$0xff]
    %v68 = vld [vmem:[%s1 + $0x158] sm:$0xff]
    %v69 = vld [vmem:[%s1 + $0x160] sm:$0xff]
    %v70 = vld [vmem:[%s1 + $0x168] sm:$0xff]
    %v71 = vld [vmem:[%s1 + $0x170] sm:$0xff]
    %v72 = vld [vmem:[%s1 + $0x178] sm:$0xff]
    %v73 = vld [vmem:[%s1 + $0x180] sm:$0xff]
    %v74 = vld [vmem:[%s1 + $0x188] sm:$0xff]
    %v75 = vld [vmem:[%s1 + $0x190] sm:$0xff]
    %v76 = vld [vmem:[%s1 + $0x198] sm:$0xff]
    %v77 = vld [vmem:[%s1 + $0x1a0] sm:$0xff]
    %v78 = vld [vmem:[%s1 + $0x1a8] sm:$0xff]
    %v79 = vld [vmem:[%s1 + $0x1b0] sm:$0xff]
    %v80 = vld [vmem:[%s1 + $0x1b8] sm:$0xff]
    %v81 = vld [vmem:[%s1 + $0x1c0] sm:$0xff]
    %v82 = vld [vmem:[%s1 + $0x1c8] sm:$0xff]
    %v83 = vld [vmem:[%s1 + $0x1d0] sm:$0xff]
    %v84 = vld [vmem:[%s1 + $0x1d8] sm:$0xff]
    %v85 = vld [vmem:[%s1 + $0x1e0] sm:$0xff]
    %v86 = vld [vmem:[%s1 + $0x1e8] sm:$0xff]
    %v87 = vld [vmem:[%s1 + $0x1f0] sm:$0xff]
    %v88 = vld [vmem:[%s1 + $0x1f8] sm:$0xff]
    %89 = vmatpush.msra.mxu0 %v55
    %90 = vmatpush.msra.mxu0 %v53
    %91 = vmatpush.msra.mxu0 %v51
    %92 = vmatpush.msra.mxu0 %v49
    %93 = vmatpush.msra.mxu0 %v47
    %94 = vmatpush.msra.mxu0 %v45
    %95 = vmatpush.msra.mxu0 %v43
    %96 = vmatpush.msra.mxu0 %v41
    %97 = vmatpush.msra.mxu0 %v39
    %98 = vmatpush.msra.mxu0 %v37
    %99 = vmatpush.msra.mxu0 %v35
    %100 = vmatpush.msra.mxu0 %v33
    %101 = vmatpush.msra.mxu0 %v31
    %102 = vmatpush.msra.mxu0 %v29
    %103 = vmatpush.msra.mxu0 %v27
    %104 = vmatpush.msra.mxu0 %v25
    %105 = vmatmul.f32.gmra.mxu0 %v21
    %v106 = vpop.f32.mrf.mxu0
    %v107 = vadd.f32 0.0, %v106
    %108 = vmatmul.f32.gmra.mxu0 %v23
    %v109 = vpop.f32.mrf.mxu0
    %v110 = vadd.f32 0.0, %v109
    %111 = vdwg.mxu0
    %112 = vmatpush.msra.mxu0 %v87
    %113 = vmatpush.msra.mxu0 %v85
    %114 = vmatpush.msra.mxu0 %v83
    %115 = vmatpush.msra.mxu0 %v81
    %116 = vmatpush.msra.mxu0 %v79
    %117 = vmatpush.msra.mxu0 %v77
    %118 = vmatpush.msra.mxu0 %v75
    %119 = vmatpush.msra.mxu0 %v73
    %120 = vmatpush.msra.mxu0 %v71
    %121 = vmatpush.msra.mxu0 %v69
    %122 = vmatpush.msra.mxu0 %v67
    %123 = vmatpush.msra.mxu0 %v65
    %124 = vmatpush.msra.mxu0 %v63
    %125 = vmatpush.msra.mxu0 %v61
    %126 = vmatpush.msra.mxu0 %v59
    %127 = vmatpush.msra.mxu0 %v57
    %128 = vmatmul.f32.gmra.mxu0 %v22
    %v129 = vpop.f32.mrf.mxu0
    %v130 = vadd.f32 %v107, %v129
    %131 = vmatmul.f32.gmra.mxu0 %v24
    %v132 = vpop.f32.mrf.mxu0
    %v133 = vadd.f32 %v110, %v132
    %134 = vdwg.mxu0
    %135 = vmatpush.msra.mxu0 %v56
    %136 = vmatpush.msra.mxu0 %v54
    %137 = vmatpush.msra.mxu0 %v52
    %138 = vmatpush.msra.mxu0 %v50
    %139 = vmatpush.msra.mxu0 %v48
    %140 = vmatpush.msra.mxu0 %v46
    %141 = vmatpush.msra.mxu0 %v44
    %142 = vmatpush.msra.mxu0 %v42
    %143 = vmatpush.msra.mxu0 %v40
    %144 = vmatpush.msra.mxu0 %v38
    %145 = vmatpush.msra.mxu0 %v36
    %146 = vmatpush.msra.mxu0 %v34
    %147 = vmatpush.msra.mxu0 %v32
    %148 = vmatpush.msra.mxu0 %v30
    %149 = vmatpush.msra.mxu0 %v28
    %150 = vmatpush.msra.mxu0 %v26
    %151 = vmatmul.f32.gmra.mxu0 %v21
    %v152 = vpop.f32.mrf.mxu0
    %v153 = vadd.f32 0.0, %v152
    %154 = vmatmul.f32.gmra.mxu0 %v23
    %v155 = vpop.f32.mrf.mxu0
    %v156 = vadd.f32 0.0, %v155
    %157 = vdwg.mxu0
    %158 = vmatpush.msra.mxu0 %v88
    %159 = vmatpush.msra.mxu0 %v86
    %160 = vmatpush.msra.mxu0 %v84
    %161 = vmatpush.msra.mxu0 %v82
    %162 = vmatpush.msra.mxu0 %v80
    %163 = vmatpush.msra.mxu0 %v78
    %164 = vmatpush.msra.mxu0 %v76
    %165 = vmatpush.msra.mxu0 %v74
    %166 = vmatpush.msra.mxu0 %v72
    %167 = vmatpush.msra.mxu0 %v70
    %168 = vmatpush.msra.mxu0 %v68
    %169 = vmatpush.msra.mxu0 %v66
    %170 = vmatpush.msra.mxu0 %v64
    %171 = vmatpush.msra.mxu0 %v62
    %172 = vmatpush.msra.mxu0 %v60
    %173 = vmatpush.msra.mxu0 %v58
    %174 = vmatmul.f32.gmra.mxu0 %v22
    %v175 = vpop.f32.mrf.mxu0
    %v176 = vadd.f32 %v153, %v175
    %177 = vmatmul.f32.gmra.mxu0 %v24
    %v178 = vpop.f32.mrf.mxu0
    %v179 = vadd.f32 %v156, %v178
    %180 = vdwg.mxu0
    %v181 = vsub.f32 %v21, %v130
    %v182 = vsub.f32 %v22, %v176
    %v183 = vsub.f32 %v23, %v133
    %v184 = vsub.f32 %v24, %v179
    %v185 = vmul.f32 %v181, %v181
    %v186 = vmul.f32 %v182, %v182
    %v187 = vmul.f32 %v183, %v183
    %v188 = vmul.f32 %v184, %v184
    %v189 = vadd.f32 %v185, %v186
    %vm190 = vcmask 1043456
    %v191 = vsel %vm190, %v187, 0.0
    %v192 = vadd.f32 %v189, %v191
    %v193 = vsel %vm190, %v188, 0.0
    %v194 = vadd.f32 %v192, %v193
    %195 = vadd.xlane.f32.xlu0 %v194
    %v196 = vpop.xlane.xlu0 %195
    %v197 = vrot.slane %v196, 4
    %v198 = vadd.f32 %v196, %v197
    %v199 = vrot.slane %v198, 2
    %v200 = vadd.f32 %v198, %v199
    %v201 = vrot.slane %v200, 1
    %v202 = vadd.f32 %v200, %v201
    %s203 = vtos %v202
    %s204 = smul.f32 %s203, 0.00032552084
    %v205 = vld [vmem:[%s2] sm:$0xf]
    %v206 = vlaneseq
    %v207 = vand.u32 %v206, 127
    %vm208 = vcmask 76800
    %v209 = vsel %vm208, %v205, -inf
    %210 = vmax.xlane.f32.xlu0 %v209
    %v211 = vpop.xlane.xlu0 %210
    %vm212 = vcmp.eq.f32.partialorder %v205, %v211
    %v213 = vsel %vm212, %v207, 10
    %v214 = vsel %vm208, %v213, 2147483647
    %v215 = vand.u32 %v214, 65535
    %v216 = vshra.s32 %v214, 16
    %v217 = vcvt.s32.f32 %v215
    %v218 = vcvt.s32.f32 %v216
    %219 = vmin.xlane.f32.xlu0 %v218
    %v220 = vpop.xlane.xlu0 %219
    %vm221 = vcmp.eq.f32.partialorder %v218, %v220
    %v222 = vsel %vm221, %v217, inf
    %223 = vmin.xlane.f32.xlu0 %v222
    %v224 = vpop.xlane.xlu0 %223
    %v225 = vcvt.f32.s32 %v224
    %v226 = vcvt.f32.s32 %v220
    %v227 = vshll.u32 %v226, 16
    %v228 = vadd.s32 %v227, %v225
    %vm229 = vcmp.eq.s32.totalorder %v207, %v228
    %v230 = vsel %vm229, 1, 0
    %v231 = vcvt.s32.f32 %v230
    %v232 = vmul.f32 %v205, 0.001
    %v233 = vmul.f32 %v211, 0.001
    %v234 = vsub.f32 %v232, %v233
    %v235 = vmul.f32 %v234, 1.442695
    %v236 = vpow.pop %v235
    %v237 = vsel %vm208, %v236, 0.0
    %238 = vadd.xlane.f32.xlu0 %v237
    %v239 = vpop.xlane.xlu0 %238
    %v240 = vlog2.pop %v239
    %v241 = vmul.f32 %v240, 0.6931472
    %v242 = vadd.f32 %v241, %v233
    %v243 = vsub.f32 %v242, %v232
    %v244 = vmul.f32 %v231, %v243
    %v245 = vsel %vm208, %v244, 0.0
    %246 = vadd.xlane.f32.xlu0 %v245
    %v247 = vpop.xlane.xlu0 %246
    %v248 = vrot.slane %v247, 4
    %v249 = vadd.f32 %v247, %v248
    %v250 = vrot.slane %v249, 2
    %v251 = vadd.f32 %v249, %v250
    %v252 = vrot.slane %v251, 1
    %v253 = vadd.f32 %v251, %v252
    %s254 = vtos %v253
    %s255 = smul.f32 %s254, 0.25
    %v256 = vsub.f32 %v205, %v211
    %v257 = vmul.f32 %v256, 1.442695
    %v258 = vpow.pop %v257
    %v259 = vsel %vm208, %v258, 0.0
    %260 = vadd.xlane.f32.xlu0 %v259
    %v261 = vpop.xlane.xlu0 %260
    %v262 = vrcp.pop %v261
    %v263 = vmul.f32 %v261, %v262
    %v264 = vsub.f32 1.0, %v263
    %v265 = vmul.f32 %v262, %v264
    %v266 = vadd.f32 %v262, %v265
    %vm267 = vweird.f32 %v261
    %vm268 = vweird.f32 %v262
    %vm269 = vmor %vm267, %vm268
    %v270 = vsel %vm269, %v262, %v266
    %v271 = vand.u32 2147483647, %v261
    %vm272 = vcmp.eq.f32.partialorder %v271, 8.507059e+37
    %v273 = vand.u32 %v261, 2147483648
    %v274 = vor.u32 1.1754944e-38, %v273
    %v275 = vsel %vm272, %v274, %v270
    %v276 = vmul.f32 %v258, %v275
    %v277 = vsel %vm208, %v276, 0.0
    %v278 = vrot.slane %v277, 4
    %v279 = vadd.f32 %v277, %v278
    %v280 = vrot.slane %v279, 2
    %v281 = vadd.f32 %v279, %v280
    %v282 = vrot.slane %v281, 1
    %v283 = vadd.f32 %v281, %v282
    %v284 = vmul.f32 %v283, 0.25
    %v285 = vmax.f32 %v284, 1e-30
    %v286 = vlog2.pop %v285
    %v287 = vmul.f32 %v286, 0.6931472
    %v288 = vmul.f32 %v284, %v287
    %vm289 = vcmask 73728
    %v290 = vsel %vm289, %v288, 0.0
    %291 = vadd.xlane.f32.xlu0 %v290
    %v292 = vpop.xlane.xlu0 %291
    %v293 = vrot.slane %v292, 4
    %v294 = vadd.f32 %v292, %v293
    %v295 = vrot.slane %v294, 2
    %v296 = vadd.f32 %v294, %v295
    %v297 = vrot.slane %v296, 1
    %v298 = vadd.f32 %v296, %v297
    %s299 = vtos %v298
    %s300 = smul.f32 %s299, 0.4342945
    %s301 = sadd.f32 %s300, 1.0
    %v302 = vld [vmem:[%s3] sm:$0xff]
    %v303 = vld [vmem:[%s3 + $0x8] sm:$0xff]
    %v304 = vld [vmem:[%s3 + $0x10] sm:$0xff]
    %v305 = vld [vmem:[%s3 + $0x18] sm:$0xff]
    %v306 = vld [vmem:[%s3 + $0x20] sm:$0xff]
    %v307 = vld [vmem:[%s3 + $0x28] sm:$0xff]
    %v308 = vld [vmem:[%s3 + $0x30] sm:$0xff]
    %v309 = vld [vmem:[%s3 + $0x38] sm:$0xff]
    %v310 = vld [vmem:[%s3 + $0x40] sm:$0xff]
    %v311 = vld [vmem:[%s3 + $0x48] sm:$0xff]
    %v312 = vld [vmem:[%s3 + $0x50] sm:$0xff]
    %v313 = vld [vmem:[%s3 + $0x58] sm:$0xff]
    %v314 = vld [vmem:[%s3 + $0x60] sm:$0xff]
    %v315 = vld [vmem:[%s3 + $0x68] sm:$0xff]
    %v316 = vld [vmem:[%s3 + $0x70] sm:$0xff]
    %v317 = vld [vmem:[%s3 + $0x78] sm:$0xff]
    %v318 = vld [vmem:[%s3 + $0x80] sm:$0xff]
    %v319 = vld [vmem:[%s3 + $0x88] sm:$0xff]
    %v320 = vld [vmem:[%s3 + $0x90] sm:$0xff]
    %v321 = vld [vmem:[%s3 + $0x98] sm:$0xff]
    %v322 = vld [vmem:[%s3 + $0xa0] sm:$0xff]
    %v323 = vld [vmem:[%s3 + $0xa8] sm:$0xff]
    %v324 = vld [vmem:[%s3 + $0xb0] sm:$0xff]
    %v325 = vld [vmem:[%s3 + $0xb8] sm:$0xff]
    %v326 = vld [vmem:[%s3 + $0xc0] sm:$0xff]
    %v327 = vld [vmem:[%s3 + $0xc8] sm:$0xff]
    %v328 = vld [vmem:[%s3 + $0xd0] sm:$0xff]
    %v329 = vld [vmem:[%s3 + $0xd8] sm:$0xff]
    %v330 = vld [vmem:[%s3 + $0xe0] sm:$0xff]
    %v331 = vld [vmem:[%s3 + $0xe8] sm:$0xff]
    %v332 = vld [vmem:[%s3 + $0xf0] sm:$0xff]
    %v333 = vld [vmem:[%s3 + $0xf8] sm:$0xff]
    %v334 = vld [vmem:[%s3 + $0x100] sm:$0xff]
    %v335 = vld [vmem:[%s3 + $0x108] sm:$0xff]
    %v336 = vld [vmem:[%s3 + $0x110] sm:$0xff]
    %v337 = vld [vmem:[%s3 + $0x118] sm:$0xff]
    %v338 = vld [vmem:[%s3 + $0x120] sm:$0xff]
    %v339 = vld [vmem:[%s3 + $0x128] sm:$0xff]
    %v340 = vld [vmem:[%s3 + $0x130] sm:$0xff]
    %v341 = vld [vmem:[%s3 + $0x138] sm:$0xff]
    %v342 = vld [vmem:[%s3 + $0x140] sm:$0xff]
    %v343 = vld [vmem:[%s3 + $0x148] sm:$0xff]
    %v344 = vld [vmem:[%s3 + $0x150] sm:$0xff]
    %v345 = vld [vmem:[%s3 + $0x158] sm:$0xff]
    %v346 = vld [vmem:[%s3 + $0x160] sm:$0xff]
    %v347 = vld [vmem:[%s3 + $0x168] sm:$0xff]
    %v348 = vld [vmem:[%s3 + $0x170] sm:$0xff]
    %v349 = vld [vmem:[%s3 + $0x178] sm:$0xff]
    %v350 = vld [vmem:[%s3 + $0x180] sm:$0xff]
    %v351 = vld [vmem:[%s3 + $0x188] sm:$0xff]
    %v352 = vld [vmem:[%s3 + $0x190] sm:$0xff]
    %v353 = vld [vmem:[%s3 + $0x198] sm:$0xff]
    %v354 = vld [vmem:[%s3 + $0x1a0] sm:$0xff]
    %v355 = vld [vmem:[%s3 + $0x1a8] sm:$0xff]
    %v356 = vld [vmem:[%s3 + $0x1b0] sm:$0xff]
    %v357 = vld [vmem:[%s3 + $0x1b8] sm:$0xff]
    %v358 = vld [vmem:[%s3 + $0x1c0] sm:$0xff]
    %v359 = vld [vmem:[%s3 + $0x1c8] sm:$0xff]
    %v360 = vld [vmem:[%s3 + $0x1d0] sm:$0xff]
    %v361 = vld [vmem:[%s3 + $0x1d8] sm:$0xff]
    %v362 = vld [vmem:[%s3 + $0x1e0] sm:$0xff]
    %v363 = vld [vmem:[%s3 + $0x1e8] sm:$0xff]
    %v364 = vld [vmem:[%s3 + $0x1f0] sm:$0xff]
    %v365 = vld [vmem:[%s3 + $0x1f8] sm:$0xff]
    %v366 = vld [vmem:[%s3 + $0x200] sm:$0xff]
    %v367 = vld [vmem:[%s3 + $0x208] sm:$0xff]
    %v368 = vld [vmem:[%s3 + $0x210] sm:$0xff]
    %v369 = vld [vmem:[%s3 + $0x218] sm:$0xff]
    %v370 = vld [vmem:[%s3 + $0x220] sm:$0xff]
    %v371 = vld [vmem:[%s3 + $0x228] sm:$0xff]
    %v372 = vld [vmem:[%s3 + $0x230] sm:$0xff]
    %v373 = vld [vmem:[%s3 + $0x238] sm:$0xff]
    %v374 = vld [vmem:[%s3 + $0x240] sm:$0xff]
    %v375 = vld [vmem:[%s3 + $0x248] sm:$0xff]
    %v376 = vld [vmem:[%s3 + $0x250] sm:$0xff]
    %v377 = vld [vmem:[%s3 + $0x258] sm:$0xff]
    %v378 = vld [vmem:[%s3 + $0x260] sm:$0xff]
    %v379 = vld [vmem:[%s3 + $0x268] sm:$0xff]
    %v380 = vld [vmem:[%s3 + $0x270] sm:$0xff]
    %v381 = vld [vmem:[%s3 + $0x278] sm:$0xff]
    %v382 = vld [vmem:[%s3 + $0x280] sm:$0xff]
    %v383 = vld [vmem:[%s3 + $0x288] sm:$0xff]
    %v384 = vld [vmem:[%s3 + $0x290] sm:$0xff]
    %v385 = vld [vmem:[%s3 + $0x298] sm:$0xff]
    %v386 = vld [vmem:[%s3 + $0x2a0] sm:$0xff]
    %v387 = vld [vmem:[%s3 + $0x2a8] sm:$0xff]
    %v388 = vld [vmem:[%s3 + $0x2b0] sm:$0xff]
    %v389 = vld [vmem:[%s3 + $0x2b8] sm:$0xff]
    %v390 = vld [vmem:[%s3 + $0x2c0] sm:$0xff]
    %v391 = vld [vmem:[%s3 + $0x2c8] sm:$0xff]
    %v392 = vld [vmem:[%s3 + $0x2d0] sm:$0xff]
    %v393 = vld [vmem:[%s3 + $0x2d8] sm:$0xff]
    %v394 = vld [vmem:[%s3 + $0x2e0] sm:$0xff]
    %v395 = vld [vmem:[%s3 + $0x2e8] sm:$0xff]
    %v396 = vld [vmem:[%s3 + $0x2f0] sm:$0xff]
    %v397 = vld [vmem:[%s3 + $0x2f8] sm:$0xff]
    %v398 = vld [vmem:[%s3 + $0x300] sm:$0xff]
    %v399 = vld [vmem:[%s3 + $0x308] sm:$0xff]
    %v400 = vld [vmem:[%s3 + $0x310] sm:$0xff]
    %v401 = vld [vmem:[%s3 + $0x318] sm:$0xff]
    %v402 = vld [vmem:[%s3 + $0x320] sm:$0xff]
    %v403 = vld [vmem:[%s3 + $0x328] sm:$0xff]
    %v404 = vld [vmem:[%s3 + $0x330] sm:$0xff]
    %v405 = vld [vmem:[%s3 + $0x338] sm:$0xff]
    %v406 = vld [vmem:[%s3 + $0x340] sm:$0xff]
    %v407 = vld [vmem:[%s3 + $0x348] sm:$0xff]
    %v408 = vld [vmem:[%s3 + $0x350] sm:$0xff]
    %v409 = vld [vmem:[%s3 + $0x358] sm:$0xff]
    %v410 = vld [vmem:[%s3 + $0x360] sm:$0xff]
    %v411 = vld [vmem:[%s3 + $0x368] sm:$0xff]
    %v412 = vld [vmem:[%s3 + $0x370] sm:$0xff]
    %v413 = vld [vmem:[%s3 + $0x378] sm:$0xff]
    %v414 = vld [vmem:[%s3 + $0x380] sm:$0xff]
    %v415 = vld [vmem:[%s3 + $0x388] sm:$0xff]
    %v416 = vld [vmem:[%s3 + $0x390] sm:$0xff]
    %v417 = vld [vmem:[%s3 + $0x398] sm:$0xff]
    %v418 = vld [vmem:[%s3 + $0x3a0] sm:$0xff]
    %v419 = vld [vmem:[%s3 + $0x3a8] sm:$0xff]
    %v420 = vld [vmem:[%s3 + $0x3b0] sm:$0xff]
    %v421 = vld [vmem:[%s3 + $0x3b8] sm:$0xff]
    %v422 = vld [vmem:[%s3 + $0x3c0] sm:$0xff]
    %v423 = vld [vmem:[%s3 + $0x3c8] sm:$0xff]
    %v424 = vld [vmem:[%s3 + $0x3d0] sm:$0xff]
    %v425 = vld [vmem:[%s3 + $0x3d8] sm:$0xff]
    %v426 = vld [vmem:[%s3 + $0x3e0] sm:$0xff]
    %v427 = vld [vmem:[%s3 + $0x3e8] sm:$0xff]
    %v428 = vld [vmem:[%s3 + $0x3f0] sm:$0xff]
    %v429 = vld [vmem:[%s3 + $0x3f8] sm:$0xff]
    %v430 = vld [vmem:[%s4] sm:$0x3]
    %v431 = vperm.slane %v430, 0
    %v432 = vsub.f32 %v302, %v431
    %v433 = vsub.f32 %v303, %v431
    %v434 = vsub.f32 %v304, %v431
    %v435 = vsub.f32 %v305, %v431
    %v436 = vsub.f32 %v306, %v431
    %v437 = vsub.f32 %v307, %v431
    %v438 = vsub.f32 %v308, %v431
    %v439 = vsub.f32 %v309, %v431
    %v440 = vsub.f32 %v310, %v431
    %v441 = vsub.f32 %v311, %v431
    %v442 = vsub.f32 %v312, %v431
    %v443 = vsub.f32 %v313, %v431
    %v444 = vsub.f32 %v314, %v431
    %v445 = vsub.f32 %v315, %v431
    %v446 = vsub.f32 %v316, %v431
    %v447 = vsub.f32 %v317, %v431
    %v448 = vsub.f32 %v318, %v431
    %v449 = vsub.f32 %v319, %v431
    %v450 = vsub.f32 %v320, %v431
    %v451 = vsub.f32 %v321, %v431
    %v452 = vsub.f32 %v322, %v431
    %v453 = vsub.f32 %v323, %v431
    %v454 = vsub.f32 %v324, %v431
    %v455 = vsub.f32 %v325, %v431
    %v456 = vsub.f32 %v326, %v431
    %v457 = vsub.f32 %v327, %v431
    %v458 = vsub.f32 %v328, %v431
    %v459 = vsub.f32 %v329, %v431
    %v460 = vsub.f32 %v330, %v431
    %v461 = vsub.f32 %v331, %v431
    %v462 = vsub.f32 %v332, %v431
    %v463 = vsub.f32 %v333, %v431
    %v464 = vsub.f32 %v334, %v431
    %v465 = vsub.f32 %v335, %v431
    %v466 = vsub.f32 %v336, %v431
    %v467 = vsub.f32 %v337, %v431
    %v468 = vsub.f32 %v338, %v431
    %v469 = vsub.f32 %v339, %v431
    %v470 = vsub.f32 %v340, %v431
    %v471 = vsub.f32 %v341, %v431
    %v472 = vsub.f32 %v342, %v431
    %v473 = vsub.f32 %v343, %v431
    %v474 = vsub.f32 %v344, %v431
    %v475 = vsub.f32 %v345, %v431
    %v476 = vsub.f32 %v346, %v431
    %v477 = vsub.f32 %v347, %v431
    %v478 = vsub.f32 %v348, %v431
    %v479 = vsub.f32 %v349, %v431
    %v480 = vsub.f32 %v350, %v431
    %v481 = vsub.f32 %v351, %v431
    %v482 = vsub.f32 %v352, %v431
    %v483 = vsub.f32 %v353, %v431
    %v484 = vsub.f32 %v354, %v431
    %v485 = vsub.f32 %v355, %v431
    %v486 = vsub.f32 %v356, %v431
    %v487 = vsub.f32 %v357, %v431
    %v488 = vsub.f32 %v358, %v431
    %v489 = vsub.f32 %v359, %v431
    %v490 = vsub.f32 %v360, %v431
    %v491 = vsub.f32 %v361, %v431
    %v492 = vsub.f32 %v362, %v431
    %v493 = vsub.f32 %v363, %v431
    %v494 = vsub.f32 %v364, %v431
    %v495 = vsub.f32 %v365, %v431
    %v496 = vsub.f32 %v366, %v431
    %v497 = vsub.f32 %v367, %v431
    %v498 = vsub.f32 %v368, %v431
    %v499 = vsub.f32 %v369, %v431
    %v500 = vsub.f32 %v370, %v431
    %v501 = vsub.f32 %v371, %v431
    %v502 = vsub.f32 %v372, %v431
    %v503 = vsub.f32 %v373, %v431
    %v504 = vsub.f32 %v374, %v431
    %v505 = vsub.f32 %v375, %v431
    %v506 = vsub.f32 %v376, %v431
    %v507 = vsub.f32 %v377, %v431
    %v508 = vsub.f32 %v378, %v431
    %v509 = vsub.f32 %v379, %v431
    %v510 = vsub.f32 %v380, %v431
    %v511 = vsub.f32 %v381, %v431
    %v512 = vsub.f32 %v382, %v431
    %v513 = vsub.f32 %v383, %v431
    %v514 = vsub.f32 %v384, %v431
    %v515 = vsub.f32 %v385, %v431
    %v516 = vsub.f32 %v386, %v431
    %v517 = vsub.f32 %v387, %v431
    %v518 = vsub.f32 %v388, %v431
    %v519 = vsub.f32 %v389, %v431
    %v520 = vsub.f32 %v390, %v431
    %v521 = vsub.f32 %v391, %v431
    %v522 = vsub.f32 %v392, %v431
    %v523 = vsub.f32 %v393, %v431
    %v524 = vsub.f32 %v394, %v431
    %v525 = vsub.f32 %v395, %v431
    %v526 = vsub.f32 %v396, %v431
    %v527 = vsub.f32 %v397, %v431
    %v528 = vsub.f32 %v398, %v431
    %v529 = vsub.f32 %v399, %v431
    %v530 = vsub.f32 %v400, %v431
    %v531 = vsub.f32 %v401, %v431
    %v532 = vsub.f32 %v402, %v431
    %v533 = vsub.f32 %v403, %v431
    %v534 = vsub.f32 %v404, %v431
    %v535 = vsub.f32 %v405, %v431
    %v536 = vsub.f32 %v406, %v431
    %v537 = vsub.f32 %v407, %v431
    %v538 = vsub.f32 %v408, %v431
    %v539 = vsub.f32 %v409, %v431
    %v540 = vsub.f32 %v410, %v431
    %v541 = vsub.f32 %v411, %v431
    %v542 = vsub.f32 %v412, %v431
    %v543 = vsub.f32 %v413, %v431
    %v544 = vsub.f32 %v414, %v431
    %v545 = vsub.f32 %v415, %v431
    %v546 = vsub.f32 %v416, %v431
    %v547 = vsub.f32 %v417, %v431
    %v548 = vsub.f32 %v418, %v431
    %v549 = vsub.f32 %v419, %v431
    %v550 = vsub.f32 %v420, %v431
    %v551 = vsub.f32 %v421, %v431
    %v552 = vsub.f32 %v422, %v431
    %v553 = vsub.f32 %v423, %v431
    %v554 = vsub.f32 %v424, %v431
    %v555 = vsub.f32 %v425, %v431
    %v556 = vsub.f32 %v426, %v431
    %v557 = vsub.f32 %v427, %v431
    %v558 = vsub.f32 %v428, %v431
    %v559 = vsub.f32 %v429, %v431
    %560 = vmatpush.msra.mxu0 %v447
    %561 = vmatpush.msra.mxu0 %v446
    %562 = vmatpush.msra.mxu0 %v445
    %563 = vmatpush.msra.mxu0 %v444
    %564 = vmatpush.msra.mxu0 %v443
    %565 = vmatpush.msra.mxu0 %v442
    %566 = vmatpush.msra.mxu0 %v441
    %567 = vmatpush.msra.mxu0 %v440
    %568 = vmatpush.msra.mxu0 %v439
    %569 = vmatpush.msra.mxu0 %v438
    %570 = vmatpush.msra.mxu0 %v437
    %571 = vmatpush.msra.mxu0 %v436
    %572 = vmatpush.msra.mxu0 %v435
    %573 = vmatpush.msra.mxu0 %v434
    %574 = vmatpush.msra.mxu0 %v433
    %575 = vmatpush.msra.mxu0 %v432
    %576 = vmatmul.f32.gmra.mxu0 1.0
    %v577 = vpop.f32.mrf.mxu0
    %v578 = vadd.f32 0.0, %v577
    %579 = vdwg.mxu0
    %580 = vmatpush.msra.mxu0 %v463
    %581 = vmatpush.msra.mxu0 %v462
    %582 = vmatpush.msra.mxu0 %v461
    %583 = vmatpush.msra.mxu0 %v460
    %584 = vmatpush.msra.mxu0 %v459
    %585 = vmatpush.msra.mxu0 %v458
    %586 = vmatpush.msra.mxu0 %v457
    %587 = vmatpush.msra.mxu0 %v456
    %588 = vmatpush.msra.mxu0 %v455
    %589 = vmatpush.msra.mxu0 %v454
    %590 = vmatpush.msra.mxu0 %v453
    %591 = vmatpush.msra.mxu0 %v452
    %592 = vmatpush.msra.mxu0 %v451
    %593 = vmatpush.msra.mxu0 %v450
    %594 = vmatpush.msra.mxu0 %v449
    %595 = vmatpush.msra.mxu0 %v448
    %596 = vmatmul.f32.gmra.mxu0 1.0
    %v597 = vpop.f32.mrf.mxu0
    %v598 = vadd.f32 %v578, %v597
    %599 = vdwg.mxu0
    %600 = vmatpush.msra.mxu0 %v479
    %601 = vmatpush.msra.mxu0 %v478
    %602 = vmatpush.msra.mxu0 %v477
    %603 = vmatpush.msra.mxu0 %v476
    %604 = vmatpush.msra.mxu0 %v475
    %605 = vmatpush.msra.mxu0 %v474
    %606 = vmatpush.msra.mxu0 %v473
    %607 = vmatpush.msra.mxu0 %v472
    %608 = vmatpush.msra.mxu0 %v471
    %609 = vmatpush.msra.mxu0 %v470
    %610 = vmatpush.msra.mxu0 %v469
    %611 = vmatpush.msra.mxu0 %v468
    %612 = vmatpush.msra.mxu0 %v467
    %613 = vmatpush.msra.mxu0 %v466
    %614 = vmatpush.msra.mxu0 %v465
    %615 = vmatpush.msra.mxu0 %v464
    %616 = vmatmul.f32.gmra.mxu0 1.0
    %v617 = vpop.f32.mrf.mxu0
    %v618 = vadd.f32 %v598, %v617
    %619 = vdwg.mxu0
    %620 = vmatpush.msra.mxu0 %v495
    %621 = vmatpush.msra.mxu0 %v494
    %622 = vmatpush.msra.mxu0 %v493
    %623 = vmatpush.msra.mxu0 %v492
    %624 = vmatpush.msra.mxu0 %v491
    %625 = vmatpush.msra.mxu0 %v490
    %626 = vmatpush.msra.mxu0 %v489
    %627 = vmatpush.msra.mxu0 %v488
    %628 = vmatpush.msra.mxu0 %v487
    %629 = vmatpush.msra.mxu0 %v486
    %630 = vmatpush.msra.mxu0 %v485
    %631 = vmatpush.msra.mxu0 %v484
    %632 = vmatpush.msra.mxu0 %v483
    %633 = vmatpush.msra.mxu0 %v482
    %634 = vmatpush.msra.mxu0 %v481
    %635 = vmatpush.msra.mxu0 %v480
    %636 = vmatmul.f32.gmra.mxu0 1.0
    %v637 = vpop.f32.mrf.mxu0
    %v638 = vadd.f32 %v618, %v637
    %639 = vdwg.mxu0
    %640 = vmatpush.msra.mxu0 %v511
    %641 = vmatpush.msra.mxu0 %v510
    %642 = vmatpush.msra.mxu0 %v509
    %643 = vmatpush.msra.mxu0 %v508
    %644 = vmatpush.msra.mxu0 %v507
    %645 = vmatpush.msra.mxu0 %v506
    %646 = vmatpush.msra.mxu0 %v505
    %647 = vmatpush.msra.mxu0 %v504
    %648 = vmatpush.msra.mxu0 %v503
    %649 = vmatpush.msra.mxu0 %v502
    %650 = vmatpush.msra.mxu0 %v501
    %651 = vmatpush.msra.mxu0 %v500
    %652 = vmatpush.msra.mxu0 %v499
    %653 = vmatpush.msra.mxu0 %v498
    %654 = vmatpush.msra.mxu0 %v497
    %655 = vmatpush.msra.mxu0 %v496
    %656 = vmatmul.f32.gmra.mxu0 1.0
    %v657 = vpop.f32.mrf.mxu0
    %v658 = vadd.f32 %v638, %v657
    %659 = vdwg.mxu0
    %660 = vmatpush.msra.mxu0 %v527
    %661 = vmatpush.msra.mxu0 %v526
    %662 = vmatpush.msra.mxu0 %v525
    %663 = vmatpush.msra.mxu0 %v524
    %664 = vmatpush.msra.mxu0 %v523
    %665 = vmatpush.msra.mxu0 %v522
    %666 = vmatpush.msra.mxu0 %v521
    %667 = vmatpush.msra.mxu0 %v520
    %668 = vmatpush.msra.mxu0 %v519
    %669 = vmatpush.msra.mxu0 %v518
    %670 = vmatpush.msra.mxu0 %v517
    %671 = vmatpush.msra.mxu0 %v516
    %672 = vmatpush.msra.mxu0 %v515
    %673 = vmatpush.msra.mxu0 %v514
    %674 = vmatpush.msra.mxu0 %v513
    %675 = vmatpush.msra.mxu0 %v512
    %676 = vmatmul.f32.gmra.mxu0 1.0
    %v677 = vpop.f32.mrf.mxu0
    %v678 = vadd.f32 %v658, %v677
    %679 = vdwg.mxu0
    %680 = vmatpush.msra.mxu0 %v543
    %681 = vmatpush.msra.mxu0 %v542
    %682 = vmatpush.msra.mxu0 %v541
    %683 = vmatpush.msra.mxu0 %v540
    %684 = vmatpush.msra.mxu0 %v539
    %685 = vmatpush.msra.mxu0 %v538
    %686 = vmatpush.msra.mxu0 %v537
    %687 = vmatpush.msra.mxu0 %v536
    %688 = vmatpush.msra.mxu0 %v535
    %689 = vmatpush.msra.mxu0 %v534
    %690 = vmatpush.msra.mxu0 %v533
    %691 = vmatpush.msra.mxu0 %v532
    %692 = vmatpush.msra.mxu0 %v531
    %693 = vmatpush.msra.mxu0 %v530
    %694 = vmatpush.msra.mxu0 %v529
    %695 = vmatpush.msra.mxu0 %v528
    %696 = vmatmul.f32.gmra.mxu0 1.0
    %v697 = vpop.f32.mrf.mxu0
    %v698 = vadd.f32 %v678, %v697
    %699 = vdwg.mxu0
    %700 = vmatpush.msra.mxu0 %v559
    %701 = vmatpush.msra.mxu0 %v558
    %702 = vmatpush.msra.mxu0 %v557
    %703 = vmatpush.msra.mxu0 %v556
    %704 = vmatpush.msra.mxu0 %v555
    %705 = vmatpush.msra.mxu0 %v554
    %706 = vmatpush.msra.mxu0 %v553
    %707 = vmatpush.msra.mxu0 %v552
    %708 = vmatpush.msra.mxu0 %v551
    %709 = vmatpush.msra.mxu0 %v550
    %710 = vmatpush.msra.mxu0 %v549
    %711 = vmatpush.msra.mxu0 %v548
    %712 = vmatpush.msra.mxu0 %v547
    %713 = vmatpush.msra.mxu0 %v546
    %714 = vmatpush.msra.mxu0 %v545
    %715 = vmatpush.msra.mxu0 %v544
    %716 = vmatmul.f32.gmra.mxu0 1.0
    %v717 = vpop.f32.mrf.mxu0
    %v718 = vadd.f32 %v698, %v717
    %719 = vdwg.mxu0
    %v720 = vmul.f32 %v432, %v432
    %v721 = vmul.f32 %v433, %v433
    %v722 = vmul.f32 %v434, %v434
    %v723 = vmul.f32 %v435, %v435
    %v724 = vmul.f32 %v436, %v436
    %v725 = vmul.f32 %v437, %v437
    %v726 = vmul.f32 %v438, %v438
    %v727 = vmul.f32 %v439, %v439
    %v728 = vmul.f32 %v440, %v440
    %v729 = vmul.f32 %v441, %v441
    %v730 = vmul.f32 %v442, %v442
    %v731 = vmul.f32 %v443, %v443
    %v732 = vmul.f32 %v444, %v444
    %v733 = vmul.f32 %v445, %v445
    %v734 = vmul.f32 %v446, %v446
    %v735 = vmul.f32 %v447, %v447
    %v736 = vmul.f32 %v448, %v448
    %v737 = vmul.f32 %v449, %v449
    %v738 = vmul.f32 %v450, %v450
    %v739 = vmul.f32 %v451, %v451
    %v740 = vmul.f32 %v452, %v452
    %v741 = vmul.f32 %v453, %v453
    %v742 = vmul.f32 %v454, %v454
    %v743 = vmul.f32 %v455, %v455
    %v744 = vmul.f32 %v456, %v456
    %v745 = vmul.f32 %v457, %v457
    %v746 = vmul.f32 %v458, %v458
    %v747 = vmul.f32 %v459, %v459
    %v748 = vmul.f32 %v460, %v460
    %v749 = vmul.f32 %v461, %v461
    %v750 = vmul.f32 %v462, %v462
    %v751 = vmul.f32 %v463, %v463
    %v752 = vmul.f32 %v464, %v464
    %v753 = vmul.f32 %v465, %v465
    %v754 = vmul.f32 %v466, %v466
    %v755 = vmul.f32 %v467, %v467
    %v756 = vmul.f32 %v468, %v468
    %v757 = vmul.f32 %v469, %v469
    %v758 = vmul.f32 %v470, %v470
    %v759 = vmul.f32 %v471, %v471
    %v760 = vmul.f32 %v472, %v472
    %v761 = vmul.f32 %v473, %v473
    %v762 = vmul.f32 %v474, %v474
    %v763 = vmul.f32 %v475, %v475
    %v764 = vmul.f32 %v476, %v476
    %v765 = vmul.f32 %v477, %v477
    %v766 = vmul.f32 %v478, %v478
    %v767 = vmul.f32 %v479, %v479
    %v768 = vmul.f32 %v480, %v480
    %v769 = vmul.f32 %v481, %v481
    %v770 = vmul.f32 %v482, %v482
    %v771 = vmul.f32 %v483, %v483
    %v772 = vmul.f32 %v484, %v484
    %v773 = vmul.f32 %v485, %v485
    %v774 = vmul.f32 %v486, %v486
    %v775 = vmul.f32 %v487, %v487
    %v776 = vmul.f32 %v488, %v488
    %v777 = vmul.f32 %v489, %v489
    %v778 = vmul.f32 %v490, %v490
    %v779 = vmul.f32 %v491, %v491
    %v780 = vmul.f32 %v492, %v492
    %v781 = vmul.f32 %v493, %v493
    %v782 = vmul.f32 %v494, %v494
    %v783 = vmul.f32 %v495, %v495
    %v784 = vmul.f32 %v496, %v496
    %v785 = vmul.f32 %v497, %v497
    %v786 = vmul.f32 %v498, %v498
    %v787 = vmul.f32 %v499, %v499
    %v788 = vmul.f32 %v500, %v500
    %v789 = vmul.f32 %v501, %v501
    %v790 = vmul.f32 %v502, %v502
    %v791 = vmul.f32 %v503, %v503
    %v792 = vmul.f32 %v504, %v504
    %v793 = vmul.f32 %v505, %v505
    %v794 = vmul.f32 %v506, %v506
    %v795 = vmul.f32 %v507, %v507
    %v796 = vmul.f32 %v508, %v508
    %v797 = vmul.f32 %v509, %v509
    %v798 = vmul.f32 %v510, %v510
    %v799 = vmul.f32 %v511, %v511
    %v800 = vmul.f32 %v512, %v512
    %v801 = vmul.f32 %v513, %v513
    %v802 = vmul.f32 %v514, %v514
    %v803 = vmul.f32 %v515, %v515
    %v804 = vmul.f32 %v516, %v516
    %v805 = vmul.f32 %v517, %v517
    %v806 = vmul.f32 %v518, %v518
    %v807 = vmul.f32 %v519, %v519
    %v808 = vmul.f32 %v520, %v520
    %v809 = vmul.f32 %v521, %v521
    %v810 = vmul.f32 %v522, %v522
    %v811 = vmul.f32 %v523, %v523
    %v812 = vmul.f32 %v524, %v524
    %v813 = vmul.f32 %v525, %v525
    %v814 = vmul.f32 %v526, %v526
    %v815 = vmul.f32 %v527, %v527
    %v816 = vmul.f32 %v528, %v528
    %v817 = vmul.f32 %v529, %v529
    %v818 = vmul.f32 %v530, %v530
    %v819 = vmul.f32 %v531, %v531
    %v820 = vmul.f32 %v532, %v532
    %v821 = vmul.f32 %v533, %v533
    %v822 = vmul.f32 %v534, %v534
    %v823 = vmul.f32 %v535, %v535
    %v824 = vmul.f32 %v536, %v536
    %v825 = vmul.f32 %v537, %v537
    %v826 = vmul.f32 %v538, %v538
    %v827 = vmul.f32 %v539, %v539
    %v828 = vmul.f32 %v540, %v540
    %v829 = vmul.f32 %v541, %v541
    %v830 = vmul.f32 %v542, %v542
    %v831 = vmul.f32 %v543, %v543
    %v832 = vmul.f32 %v544, %v544
    %v833 = vmul.f32 %v545, %v545
    %v834 = vmul.f32 %v546, %v546
    %v835 = vmul.f32 %v547, %v547
    %v836 = vmul.f32 %v548, %v548
    %v837 = vmul.f32 %v549, %v549
    %v838 = vmul.f32 %v550, %v550
    %v839 = vmul.f32 %v551, %v551
    %v840 = vmul.f32 %v552, %v552
    %v841 = vmul.f32 %v553, %v553
    %v842 = vmul.f32 %v554, %v554
    %v843 = vmul.f32 %v555, %v555
    %v844 = vmul.f32 %v556, %v556
    %v845 = vmul.f32 %v557, %v557
    %v846 = vmul.f32 %v558, %v558
    %v847 = vmul.f32 %v559, %v559
    %848 = vmatpush.msra.mxu0 %v735
    %849 = vmatpush.msra.mxu0 %v734
    %850 = vmatpush.msra.mxu0 %v733
    %851 = vmatpush.msra.mxu0 %v732
    %852 = vmatpush.msra.mxu0 %v731
    %853 = vmatpush.msra.mxu0 %v730
    %854 = vmatpush.msra.mxu0 %v729
    %855 = vmatpush.msra.mxu0 %v728
    %856 = vmatpush.msra.mxu0 %v727
    %857 = vmatpush.msra.mxu0 %v726
    %858 = vmatpush.msra.mxu0 %v725
    %859 = vmatpush.msra.mxu0 %v724
    %860 = vmatpush.msra.mxu0 %v723
    %861 = vmatpush.msra.mxu0 %v722
    %862 = vmatpush.msra.mxu0 %v721
    %863 = vmatpush.msra.mxu0 %v720
    %864 = vmatmul.f32.gmra.mxu0 1.0
    %v865 = vpop.f32.mrf.mxu0
    %v866 = vadd.f32 0.0, %v865
    %867 = vdwg.mxu0
    %868 = vmatpush.msra.mxu0 %v751
    %869 = vmatpush.msra.mxu0 %v750
    %870 = vmatpush.msra.mxu0 %v749
    %871 = vmatpush.msra.mxu0 %v748
    %872 = vmatpush.msra.mxu0 %v747
    %873 = vmatpush.msra.mxu0 %v746
    %874 = vmatpush.msra.mxu0 %v745
    %875 = vmatpush.msra.mxu0 %v744
    %876 = vmatpush.msra.mxu0 %v743
    %877 = vmatpush.msra.mxu0 %v742
    %878 = vmatpush.msra.mxu0 %v741
    %879 = vmatpush.msra.mxu0 %v740
    %880 = vmatpush.msra.mxu0 %v739
    %881 = vmatpush.msra.mxu0 %v738
    %882 = vmatpush.msra.mxu0 %v737
    %883 = vmatpush.msra.mxu0 %v736
    %884 = vmatmul.f32.gmra.mxu0 1.0
    %v885 = vpop.f32.mrf.mxu0
    %v886 = vadd.f32 %v866, %v885
    %887 = vdwg.mxu0
    %888 = vmatpush.msra.mxu0 %v767
    %889 = vmatpush.msra.mxu0 %v766
    %890 = vmatpush.msra.mxu0 %v765
    %891 = vmatpush.msra.mxu0 %v764
    %892 = vmatpush.msra.mxu0 %v763
    %893 = vmatpush.msra.mxu0 %v762
    %894 = vmatpush.msra.mxu0 %v761
    %895 = vmatpush.msra.mxu0 %v760
    %896 = vmatpush.msra.mxu0 %v759
    %897 = vmatpush.msra.mxu0 %v758
    %898 = vmatpush.msra.mxu0 %v757
    %899 = vmatpush.msra.mxu0 %v756
    %900 = vmatpush.msra.mxu0 %v755
    %901 = vmatpush.msra.mxu0 %v754
    %902 = vmatpush.msra.mxu0 %v753
    %903 = vmatpush.msra.mxu0 %v752
    %904 = vmatmul.f32.gmra.mxu0 1.0
    %v905 = vpop.f32.mrf.mxu0
    %v906 = vadd.f32 %v886, %v905
    %907 = vdwg.mxu0
    %908 = vmatpush.msra.mxu0 %v783
    %909 = vmatpush.msra.mxu0 %v782
    %910 = vmatpush.msra.mxu0 %v781
    %911 = vmatpush.msra.mxu0 %v780
    %912 = vmatpush.msra.mxu0 %v779
    %913 = vmatpush.msra.mxu0 %v778
    %914 = vmatpush.msra.mxu0 %v777
    %915 = vmatpush.msra.mxu0 %v776
    %916 = vmatpush.msra.mxu0 %v775
    %917 = vmatpush.msra.mxu0 %v774
    %918 = vmatpush.msra.mxu0 %v773
    %919 = vmatpush.msra.mxu0 %v772
    %920 = vmatpush.msra.mxu0 %v771
    %921 = vmatpush.msra.mxu0 %v770
    %922 = vmatpush.msra.mxu0 %v769
    %923 = vmatpush.msra.mxu0 %v768
    %924 = vmatmul.f32.gmra.mxu0 1.0
    %v925 = vpop.f32.mrf.mxu0
    %v926 = vadd.f32 %v906, %v925
    %927 = vdwg.mxu0
    %928 = vmatpush.msra.mxu0 %v799
    %929 = vmatpush.msra.mxu0 %v798
    %930 = vmatpush.msra.mxu0 %v797
    %931 = vmatpush.msra.mxu0 %v796
    %932 = vmatpush.msra.mxu0 %v795
    %933 = vmatpush.msra.mxu0 %v794
    %934 = vmatpush.msra.mxu0 %v793
    %935 = vmatpush.msra.mxu0 %v792
    %936 = vmatpush.msra.mxu0 %v791
    %937 = vmatpush.msra.mxu0 %v790
    %938 = vmatpush.msra.mxu0 %v789
    %939 = vmatpush.msra.mxu0 %v788
    %940 = vmatpush.msra.mxu0 %v787
    %941 = vmatpush.msra.mxu0 %v786
    %942 = vmatpush.msra.mxu0 %v785
    %943 = vmatpush.msra.mxu0 %v784
    %944 = vmatmul.f32.gmra.mxu0 1.0
    %v945 = vpop.f32.mrf.mxu0
    %v946 = vadd.f32 %v926, %v945
    %947 = vdwg.mxu0
    %948 = vmatpush.msra.mxu0 %v815
    %949 = vmatpush.msra.mxu0 %v814
    %950 = vmatpush.msra.mxu0 %v813
    %951 = vmatpush.msra.mxu0 %v812
    %952 = vmatpush.msra.mxu0 %v811
    %953 = vmatpush.msra.mxu0 %v810
    %954 = vmatpush.msra.mxu0 %v809
    %955 = vmatpush.msra.mxu0 %v808
    %956 = vmatpush.msra.mxu0 %v807
    %957 = vmatpush.msra.mxu0 %v806
    %958 = vmatpush.msra.mxu0 %v805
    %959 = vmatpush.msra.mxu0 %v804
    %960 = vmatpush.msra.mxu0 %v803
    %961 = vmatpush.msra.mxu0 %v802
    %962 = vmatpush.msra.mxu0 %v801
    %963 = vmatpush.msra.mxu0 %v800
    %964 = vmatmul.f32.gmra.mxu0 1.0
    %v965 = vpop.f32.mrf.mxu0
    %v966 = vadd.f32 %v946, %v965
    %967 = vdwg.mxu0
    %968 = vmatpush.msra.mxu0 %v831
    %969 = vmatpush.msra.mxu0 %v830
    %970 = vmatpush.msra.mxu0 %v829
    %971 = vmatpush.msra.mxu0 %v828
    %972 = vmatpush.msra.mxu0 %v827
    %973 = vmatpush.msra.mxu0 %v826
    %974 = vmatpush.msra.mxu0 %v825
    %975 = vmatpush.msra.mxu0 %v824
    %976 = vmatpush.msra.mxu0 %v823
    %977 = vmatpush.msra.mxu0 %v822
    %978 = vmatpush.msra.mxu0 %v821
    %979 = vmatpush.msra.mxu0 %v820
    %980 = vmatpush.msra.mxu0 %v819
    %981 = vmatpush.msra.mxu0 %v818
    %982 = vmatpush.msra.mxu0 %v817
    %983 = vmatpush.msra.mxu0 %v816
    %984 = vmatmul.f32.gmra.mxu0 1.0
    %v985 = vpop.f32.mrf.mxu0
    %v986 = vadd.f32 %v966, %v985
    %987 = vdwg.mxu0
    %988 = vmatpush.msra.mxu0 %v847
    %989 = vmatpush.msra.mxu0 %v846
    %990 = vmatpush.msra.mxu0 %v845
    %991 = vmatpush.msra.mxu0 %v844
    %992 = vmatpush.msra.mxu0 %v843
    %993 = vmatpush.msra.mxu0 %v842
    %994 = vmatpush.msra.mxu0 %v841
    %995 = vmatpush.msra.mxu0 %v840
    %996 = vmatpush.msra.mxu0 %v839
    %997 = vmatpush.msra.mxu0 %v838
    %998 = vmatpush.msra.mxu0 %v837
    %999 = vmatpush.msra.mxu0 %v836
    %1000 = vmatpush.msra.mxu0 %v835
    %1001 = vmatpush.msra.mxu0 %v834
    %1002 = vmatpush.msra.mxu0 %v833
    %1003 = vmatpush.msra.mxu0 %v832
    %1004 = vmatmul.f32.gmra.mxu0 1.0
    %v1005 = vpop.f32.mrf.mxu0
    %v1006 = vadd.f32 %v986, %v1005
    %1007 = vdwg.mxu0
    %v1008 = vmul.f32 %v718, 0.0009765625
    %v1009 = vmul.f32 %v1006, 0.0009765625
    %v1010 = vmul.f32 %v1008, %v1008
    %v1011 = vsub.f32 %v1009, %v1010
    %v1012 = vmax.f32 %v1011, 0.0
    %v1014 = vrot.slane %v1012, 7
    %v1016 = vsub.f32 %v430, %v1014
    %v1017 = vmul.f32 %v1016, %v1016
    %v1019 = vrot.slane %v1017, 1
    %vm1021 = vcmask 57344
    %v1022 = vsel %vm1021, %v1019, 0.0
    %1023 = vadd.xlane.f32.xlu0 %v1022
    %v1024 = vpop.xlane.xlu0 %1023
    %v1025 = vrot.slane %v1024, 4
    %v1026 = vadd.f32 %v1024, %v1025
    %v1027 = vrot.slane %v1026, 2
    %v1028 = vadd.f32 %v1026, %v1027
    %v1029 = vrot.slane %v1028, 1
    %v1030 = vadd.f32 %v1028, %v1029
    %s1031 = vtos %v1030
    %v1032 = vstv %s1031
    %v1033 = vrsqrt.pop %v1032
    %v1034 = vmul.f32 %v1033, %v1032
    %v1035 = vmul.f32 %v1034, %v1033
    %v1036 = vmul.f32 0.5, %v1035
    %v1037 = vsub.f32 1.5, %v1036
    %v1038 = vmul.f32 %v1033, %v1037
    %v1039 = vmul.f32 %v1032, %v1038
    %vm1040 = vcmp.eq.f32.partialorder %v1032, inf
    %v1041 = vsel %vm1040, %v1032, %v1039
    %vm1042 = vcmp.eq.f32.partialorder %v1032, 0.0
    %v1043 = vand.u32 %v1032, 2147483648
    %v1044 = vsel %vm1042, %v1043, %v1041
    %s1045 = vtos %v1044
    %v1046 = vsel %vm1021, %v1010, 0.0
    %1047 = vadd.xlane.f32.xlu0 %v1046
    %v1048 = vpop.xlane.xlu0 %1047
    %v1049 = vrot.slane %v1048, 4
    %v1050 = vadd.f32 %v1048, %v1049
    %v1051 = vrot.slane %v1050, 2
    %v1052 = vadd.f32 %v1050, %v1051
    %v1053 = vrot.slane %v1052, 1
    %v1054 = vadd.f32 %v1052, %v1053
    %s1055 = vtos %v1054
    %v1056 = vstv %s1055
    %v1057 = vrsqrt.pop %v1056
    %v1058 = vmul.f32 %v1057, %v1056
    %v1059 = vmul.f32 %v1058, %v1057
    %v1060 = vmul.f32 0.5, %v1059
    %v1061 = vsub.f32 1.5, %v1060
    %v1062 = vmul.f32 %v1057, %v1061
    %v1063 = vmul.f32 %v1056, %v1062
    %vm1064 = vcmp.eq.f32.partialorder %v1056, inf
    %v1065 = vsel %vm1064, %v1056, %v1063
    %vm1066 = vcmp.eq.f32.partialorder %v1056, 0.0
    %v1067 = vand.u32 %v1056, 2147483648
    %v1068 = vsel %vm1066, %v1067, %v1065
    %s1069 = vtos %v1068
    %s1070 = sadd.f32 %s1045, %s1069
    %s1071 = scalar_lea.smem [#allocation2], 0
    %1072 = sst [smem:[%s1071]] %s255
    %s1073 = scalar_lea.smem [#allocation2], 1
    %1074 = sst [smem:[%s1073]] %s301
    %s1075 = scalar_lea.smem [#allocation2], 2
    %1076 = sst [smem:[%s1075]] %s204
    %s1077 = scalar_lea.smem [#allocation2], 3
    %1078 = sst [smem:[%s1077]] %s1070
    // Predicated region
    $region22: #{train_step_losses.1} parent=1 // pred_check
      _
    $region23: #{train_step_losses.1} parent=1 // pred_check_branch
      %1080 = sbr.rel (0) target = $region25
    $region24: #{train_step_losses.1} parent=1 // pred_region
      %1082 = vsyncadd [#allocation3], 0
      %s1084 = sshll.u32 %s5, 4
      %s1085 = int_to_ptr.vmem [resolvable:$true] %s1084
      %1087 = dma.smem_to_vmem [#allocation2], 16, %s1085, [#allocation3]
    $region25: #{train_step_losses.1} parent=1 // pred_fallthru
      _
    // Predicated region
    $region26: #{train_step_losses.1} parent=1 // pred_check
      _
    $region27: #{train_step_losses.1} parent=1 // pred_check_branch
      %1089 = sbr.rel (0) target = $region29
    $region28: #{train_step_losses.1} parent=1 // pred_region
      %1091 = dma.done [#allocation3], 16
    $region29: #{train_step_losses.1} parent=1 // pred_fallthru
      _
    %1092 = sfence
    %1093 = vsyncpa [#allocation3], 1

</llo_original>
